<compile_context>
chip_gen: v7x
topology: tpu7x:2x2x1
jax: 0.10.0
libtpu: 0.0.40
codegen_flags: <defaults>
</compile_context>

<pallas_src>
import jax
import jax.numpy as jnp
from jax.experimental import pallas as pl
from jax.experimental.pallas import tpu as pltpu

IN_FEATURES = 20
HIDDEN = 64
OUT_FEATURES = 1


def _cdiv(a, b):
    return (a + b - 1) // b


def _round_up(n, m):
    return ((n + m - 1) // m) * m


def mlp_kernel(x_ref, w1t_ref, b1_ref, w2_ref, b2_ref, o_ref):
    # x_ref:   [TB, 20]  natural batch-major tile (streamed, pipelined)
    # w1t_ref: [20, 64]  fc1 weight, pre-transposed once, resident in VMEM
    # b1_ref:  [1, 64]   fc1 bias, resident in VMEM
    # w2_ref:  [1, 64]   fc2 weight row, resident in VMEM
    # b2_ref:  [1, 1]    fc2 bias scalar, in SMEM
    # o_ref:   [TB, 1]   output tile
    h = jnp.dot(x_ref[...], w1t_ref[...],
                preferred_element_type=jnp.float32)          # [TB, 64]  MXU
    h = jnp.maximum(h + b1_ref[...], 0.0)                    # bias + ReLU (f32, VPU)
    # fc2 (64 -> 1): VPU multiply + cross-lane (XLU) reduce. An N=1 MXU matmul
    # would waste a full matmul issue for a single output column.
    y = jnp.sum(h * w2_ref[...], axis=1, keepdims=True)      # [TB, 1]
    o_ref[...] = (y + b2_ref[0, 0]).astype(o_ref.dtype)


def mini_mlp_forward(x, w1, b1, w2, b2, *, block_b=8192):
    """Forward pass of MiniMLP.

    x:  [B, 20] float32
    w1: [64, 20], b1: [64], w2: [1, 64], b2: [1]   (PyTorch nn.Linear layout)
    returns [B, 1]
    """
    B = x.shape[0]
    if B <= 512:
        # Single tile; block dims equal the array dims (no divisibility constraint).
        TB = B
    else:
        # At least 2 tiles (so a v7x megacore can shard the batch axis), capped
        # at block_b; multiple of 8 keeps the sublane dim of the x tile aligned.
        TB = min(block_b, _round_up(_cdiv(B, 2), 8))
    n_tiles = _cdiv(B, TB)

    w1_t = w1.T                          # [20, 64]  (tiny one-time transpose)
    b1_row = b1.reshape(1, HIDDEN)       # [1, 64]
    w2_row = w2.reshape(1, HIDDEN)       # [1, 64]
    b2_s = b2.reshape(1, 1)              # [1, 1]

    out = pl.pallas_call(
        mlp_kernel,
        out_shape=jax.ShapeDtypeStruct((B, OUT_FEATURES), x.dtype),
        grid_spec=pltpu.PrefetchScalarGridSpec(
            num_scalar_prefetch=0,
            grid=(n_tiles,),
            in_specs=[
                # Streaming x tile in its natural layout (no wrapper transpose/pad).
                # If DMA is still exposed at large B, sweep pipeline_mode=pl.Buffered(3) here.
                pl.BlockSpec((TB, IN_FEATURES), lambda i: (i, 0)),
                # Weights / biases: constant index_map -> resident in VMEM.
                pl.BlockSpec((IN_FEATURES, HIDDEN), lambda i: (0, 0)),
                pl.BlockSpec((1, HIDDEN), lambda i: (0, 0)),
                pl.BlockSpec((1, HIDDEN), lambda i: (0, 0)),
                # Scalar output bias in SMEM (no vector DMA).
                pl.BlockSpec(memory_space=pltpu.MemorySpace.SMEM),
            ],
            # Ragged boundary tile is masked by Pallas on the store.
            out_specs=pl.BlockSpec((TB, OUT_FEATURES), lambda i: (i, 0)),
        ),
        compiler_params=pltpu.CompilerParams(
            # Shard batch tiles across TensorCores on v7x; no-op on v5e/v6e.
            dimension_semantics=("parallel",),
            # Explicit VMEM budget: lane-padded x/out tiles at TB=8192 are ~16 MiB
            # double-buffered plus intermediates — above v5e's 16 MiB scoped
            # default, comfortably below physical VMEM on v5e/v6e (128 MiB) and
            # v7x (64 MiB per TC).
            vmem_limit_bytes=48 * 1024 * 1024,
        ),
    )(x, w1_t, b1_row, w2_row, b2_s)

    return out


def init_params(key):
    # PyTorch nn.Linear default init: uniform(-1/sqrt(fan_in), 1/sqrt(fan_in)),
    # weights stored [out_features, in_features].
    k1, k2, k3, k4 = jax.random.split(key, 4)
    bound1 = 1.0 / (IN_FEATURES ** 0.5)
    bound2 = 1.0 / (HIDDEN ** 0.5)
    w1 = jax.random.uniform(k1, (HIDDEN, IN_FEATURES), jnp.float32, -bound1, bound1)
    b1 = jax.random.uniform(k2, (HIDDEN,), jnp.float32, -bound1, bound1)
    w2 = jax.random.uniform(k3, (OUT_FEATURES, HIDDEN), jnp.float32, -bound2, bound2)
    b2 = jax.random.uniform(k4, (OUT_FEATURES,), jnp.float32, -bound2, bound2)
    return w1, b1, w2, b2


if __name__ == "__main__":
    key = jax.random.PRNGKey(0)
    kx, kp = jax.random.split(key)

    B = 8
    x = jax.random.normal(kx, (B, IN_FEATURES), jnp.float32)
    w1, b1, w2, b2 = init_params(kp)

    out = mini_mlp_forward(x, w1, b1, w2, b2)
    out = jax.block_until_ready(out)

    # Reference check in plain JAX (PyTorch-equivalent forward).
    ref = jnp.maximum(x @ w1.T + b1, 0.0) @ w2.T + b2
    assert out.shape == (B, OUT_FEATURES)
    assert jnp.allclose(out, ref, atol=1e-5, rtol=1e-5)

    print("KERNEL_OK")
</pallas_src>

<mosaic_0001>
module attributes {stable_mosaic.version = 11 : i64} {
  func.func @mlp_kernel(%arg0: i32, %arg1: memref<8x20xf32, #tpu.memory_space<vmem>>, %arg2: memref<20x64xf32, #tpu.memory_space<vmem>>, %arg3: memref<1x64xf32, #tpu.memory_space<vmem>>, %arg4: memref<1x64xf32, #tpu.memory_space<vmem>>, %arg5: memref<1x1xf32, #tpu.memory_space<smem>>, %arg6: memref<8x1xf32, #tpu.memory_space<vmem>>) attributes {dimension_semantics = [#tpu.dimension_semantics<parallel>], iteration_bounds = array<i64: 1>, scalar_prefetch = 0 : i64, scratch_operands = 0 : i64, tpu.core_type = #tpu.core_type<tc>, window_params = [{transform_indices = @transform_0, window_bounds = array<i64: 8, 20>}, {pipeline_mode = #tpu.pipeline_mode<synchronous>, transform_indices = @transform_1, window_bounds = array<i64: 20, 64>}, {pipeline_mode = #tpu.pipeline_mode<synchronous>, transform_indices = @transform_2, window_bounds = array<i64: 1, 64>}, {pipeline_mode = #tpu.pipeline_mode<synchronous>, transform_indices = @transform_3, window_bounds = array<i64: 1, 64>}, {transform_indices = @transform_4, window_bounds = array<i64: 1, 1>}, {transform_indices = @transform_5, window_bounds = array<i64: 8, 1>}]} {
    %c0 = arith.constant 0 : index
    %c0_0 = arith.constant 0 : index
    %0 = vector.load %arg1[%c0, %c0_0] : memref<8x20xf32, #tpu.memory_space<vmem>>, vector<8x20xf32>
    %c0_1 = arith.constant 0 : index
    %c0_2 = arith.constant 0 : index
    %1 = vector.load %arg2[%c0_1, %c0_2] : memref<20x64xf32, #tpu.memory_space<vmem>>, vector<20x64xf32>
    %cst = arith.constant dense<0.000000e+00> : vector<8x64xf32>
    %2 = tpu.matmul %0, %1, %cst {dimension_numbers = #tpu.dot_dimension_numbers<[1], [0], [0], [1], [0, 0, 1, 1], [], []>} : vector<8x20xf32>, vector<20x64xf32>, vector<8x64xf32> -> vector<8x64xf32>
    %c0_3 = arith.constant 0 : index
    %c0_4 = arith.constant 0 : index
    %3 = vector.load %arg3[%c0_3, %c0_4] : memref<1x64xf32, #tpu.memory_space<vmem>>, vector<1x64xf32>
    %4 = vector.broadcast %3 : vector<1x64xf32> to vector<8x64xf32>
    %5 = arith.addf %2, %4 : vector<8x64xf32>
    %cst_5 = arith.constant 0.000000e+00 : f32
    %6 = vector.broadcast %cst_5 : f32 to vector<8x64xf32>
    %7 = arith.maximumf %5, %6 : vector<8x64xf32>
    %c0_6 = arith.constant 0 : index
    %c0_7 = arith.constant 0 : index
    %8 = vector.load %arg4[%c0_6, %c0_7] : memref<1x64xf32, #tpu.memory_space<vmem>>, vector<1x64xf32>
    %9 = vector.broadcast %8 : vector<1x64xf32> to vector<8x64xf32>
    %10 = arith.mulf %7, %9 : vector<8x64xf32>
    %cst_8 = arith.constant dense<0.000000e+00> : vector<8xf32>
    %11 = vector.multi_reduction <add>, %10, %cst_8 [1] : vector<8x64xf32> to vector<8xf32>
    %12 = vector.shape_cast %11 : vector<8xf32> to vector<8x1xf32>
    %c0_9 = arith.constant 0 : index
    %c0_10 = arith.constant 0 : index
    %13 = memref.load %arg5[%c0_9, %c0_10] : memref<1x1xf32, #tpu.memory_space<smem>>
    %14 = vector.broadcast %13 : f32 to vector<8x1xf32>
    %15 = arith.addf %12, %14 : vector<8x1xf32>
    %c0_11 = arith.constant 0 : index
    %c0_12 = arith.constant 0 : index
    %16 = vector.load %arg6[%c0_11, %c0_12] : memref<8x1xf32, #tpu.memory_space<vmem>>, vector<8x1xf32>
    tpu.vector_store %arg6[%c0_11, %c0_12], %15 {strides = array<i32>} : memref<8x1xf32, #tpu.memory_space<vmem>>, vector<8x1xf32>,
    return
  }
  func.func @transform_0(%arg0: i32) -> (i32, i32) {
    %c0_i32 = arith.constant 0 : i32
    %c0_i32_0 = arith.constant 0 : i32
    return %arg0, %c0_i32 : i32, i32
  }
  func.func @transform_1(%arg0: i32) -> (i32, i32) {
    %c0_i32 = arith.constant 0 : i32
    %c0_i32_0 = arith.constant 0 : i32
    %c0_i32_1 = arith.constant 0 : i32
    return %c0_i32, %c0_i32_0 : i32, i32
  }
  func.func @transform_2(%arg0: i32) -> (i32, i32) {
    %c0_i32 = arith.constant 0 : i32
    %c0_i32_0 = arith.constant 0 : i32
    %c0_i32_1 = arith.constant 0 : i32
    return %c0_i32, %c0_i32_0 : i32, i32
  }
  func.func @transform_3(%arg0: i32) -> (i32, i32) {
    %c0_i32 = arith.constant 0 : i32
    %c0_i32_0 = arith.constant 0 : i32
    %c0_i32_1 = arith.constant 0 : i32
    return %c0_i32, %c0_i32_0 : i32, i32
  }
  func.func @transform_4(%arg0: i32) -> (i32, i32) {
    %c0_i32 = arith.constant 0 : i32
    %c0_i32_0 = arith.constant 0 : i32
    %c0_i32_1 = arith.constant 0 : i32
    return %c0_i32, %c0_i32_0 : i32, i32
  }
  func.func @transform_5(%arg0: i32) -> (i32, i32) {
    %c0_i32 = arith.constant 0 : i32
    %c0_i32_0 = arith.constant 0 : i32
    return %arg0, %c0_i32 : i32, i32
  }
}

</mosaic_0001>

<llo_original>
// kernel: tpu_custom_call.1
$region0: #{tpu_custom_call.1}
  #allocation0 [shape = 'u32[]', space=smem, size = 0x4, offset = 0x4, fixed_abs, tag = 'smem constant byte address 0x4 - core index']
  #allocation1 [shape = 'u32[144,128]{1,0:T(1,128)}', space=vmem, size = 0x12000, scoped, tag = 'internal scratch']
  #allocation2 [shape = 'f32[1,1]{1,0:T(1,128)S(6)}', space=smem, size = 0x200, scoped, tag = 'scoped memory for tpu_custom_call.1']
  %s0 = inlined_call_operand.hbm [shape: f32[8,20], index: 0, kind: input, shape index: {}]
  %s1 = inlined_call_operand.hbm [shape: f32[20,64], index: 1, kind: input, shape index: {}]
  %s2 = inlined_call_operand.vmem [shape: f32[1,64], index: 2, kind: input, shape index: {}]
  %s3 = inlined_call_operand.vmem [shape: f32[1,64], index: 3, kind: input, shape index: {}]
  %s4 = inlined_call_operand.<no memory space> [shape: f32[1,1], index: 4, kind: input, shape index: {}]
  %s5 = inlined_call_operand.vmem [shape: f32[8,1], index: 5, kind: output, shape index: {}]
  %s6 = sld [smem:[#allocation0]]
  $region38: #{tpu_custom_call.1} parent=0
    _
  %s8 = ssub.s32 1, %s6
  %s9 = scalar_select 0, %s8, %s6
  %10 = sst [smem:[#allocation2]] %s4
  $region1: #{tpu_custom_call.1} parent=0
    #allocation3 [shape = 'u8[4096]{0}', space=vmem, size = 0x1000, scoped, tag = 'input window, operand 0, single buffered']
    #allocation4 [shape = 's32[1]{0}', space=sflag, size = 0x4, scoped, tag = 'scoped memory for tpu_custom_call.1']
    #allocation5 [shape = 'u8[12288]{0}', space=vmem, size = 0x3000, scoped, tag = 'input window, operand 1, single buffered']
    #allocation6 [shape = 's32[1]{0}', space=sflag, size = 0x4, scoped, tag = 'scoped memory for tpu_custom_call.1']
    %11 = vsyncpa [#allocation4], 0
    %12 = vsyncpa [#allocation6], 0
    // Predicated region
    $region2: #{tpu_custom_call.1} parent=1 // pred_check
      _
    $region3: #{tpu_custom_call.1} parent=1 // pred_check_branch
      %14 = sbr.rel (0) target = $region5
    $region4: #{tpu_custom_call.1} parent=1 // pred_region
      %s16 = ssub.s32 128, 128
      %17 = vsyncadd [#allocation4], %s16
      %s19 = sshll.u32 [#allocation3], 4
      %s20 = int_to_ptr.vmem [resolvable:$true] %s19
      %22 = dma.hbm_to_vmem [thread:$0]  %s0, 128, %s20, [#allocation4]
    $region5: #{tpu_custom_call.1} parent=1 // pred_fallthru
      _
    // Predicated region
    $region6: #{tpu_custom_call.1} parent=1 // pred_check
      _
    $region7: #{tpu_custom_call.1} parent=1 // pred_check_branch
      %24 = sbr.rel (0) target = $region9
    $region8: #{tpu_custom_call.1} parent=1 // pred_region
      %s26 = ssub.s32 384, 384
      %27 = vsyncadd [#allocation6], %s26
      %s28 = sshll.u32 [#allocation5], 4
      %s29 = int_to_ptr.vmem [resolvable:$true] %s28
      %34 = dma.hbm_to_vmem [thread:$0]  %s1, 384, %s29, [#allocation6], 128, 128, 8
    $region9: #{tpu_custom_call.1} parent=1 // pred_fallthru
      _
    // Predicated region
    $region10: #{tpu_custom_call.1} parent=1 // pred_check
      _
    $region11: #{tpu_custom_call.1} parent=1 // pred_check_branch
      %36 = sbr.rel (0) target = $region13
    $region12: #{tpu_custom_call.1} parent=1 // pred_region
      _
    $region13: #{tpu_custom_call.1} parent=1 // pred_fallthru
      _
    // Predicated region
    $region14: #{tpu_custom_call.1} parent=1 // pred_check
      _
    $region15: #{tpu_custom_call.1} parent=1 // pred_check_branch
      %38 = sbr.rel (0) target = $region17
    $region16: #{tpu_custom_call.1} parent=1 // pred_region
      _
    $region17: #{tpu_custom_call.1} parent=1 // pred_fallthru
      _
    // Predicated region
    $region18: #{tpu_custom_call.1} parent=1 // pred_check
      _
    $region19: #{tpu_custom_call.1} parent=1 // pred_check_branch
      %40 = sbr.rel (0) target = $region21
    $region20: #{tpu_custom_call.1} parent=1 // pred_region
      _
    $region21: #{tpu_custom_call.1} parent=1 // pred_fallthru
      _
    // Predicated region
    $region22: #{tpu_custom_call.1} parent=1 // pred_check
      _
    $region23: #{tpu_custom_call.1} parent=1 // pred_check_branch
      %42 = sbr.rel (0) target = $region25
    $region24: #{tpu_custom_call.1} parent=1 // pred_region
      %43 = dma.done [#allocation4], 128
    $region25: #{tpu_custom_call.1} parent=1 // pred_fallthru
      _
    // Predicated region
    $region26: #{tpu_custom_call.1} parent=1 // pred_check
      _
    $region27: #{tpu_custom_call.1} parent=1 // pred_check_branch
      %45 = sbr.rel (0) target = $region29
    $region28: #{tpu_custom_call.1} parent=1 // pred_region
      %46 = dma.done [#allocation6], 384
    $region29: #{tpu_custom_call.1} parent=1 // pred_fallthru
      _
    %v47 = vld [vmem:[#allocation3] sm:$0xff]
    %v48 = vld [vmem:[#allocation5] sm:$0xff]
    %v49 = vld [vmem:[#allocation5 + $0x8] sm:$0xff]
    %v50 = vld [vmem:[#allocation5 + $0x10] sm:$0xf]
    %v51 = vld [vmem:[%s2] sm:$0x1]
    %v53 = vlaneseq
    %v54 = vshrl.u32 %v53, 7
    %v55 = vsub.s32 0, %v54
    %v56 = vrot.slane %v51, %v55
    %vm58 = vcmask 162816
    %v60 = vsel %vm58, %v47, 0
    %vm62 = vcmask 1043456
    %v64 = vsel %vm62, %v50, 0
    %66 = vmatprep.subr.mxu0 0.0
    %67 = vmatpush1.msra.mxu0 %v48
    %68 = vmatprep.subr.mxu0 0.0
    %69 = vmatpush1.msra.mxu0 %v49
    %70 = vmatprep.subr.mxu0 0.0
    %71 = vmatpush1.msra.mxu0 %v64
    %72 = vmatprep.subr.mxu0 0.0
    %73 = vmatpush1.msra.mxu0 0.0
    %74 = vmatprep.subr.mxu0 0.0
    %75 = vmatpush1.msra.mxu0 0.0
    %76 = vmatprep.subr.mxu0 0.0
    %77 = vmatpush1.msra.mxu0 0.0
    %78 = vmatprep.subr.mxu0 0.0
    %79 = vmatpush1.msra.mxu0 0.0
    %80 = vmatprep.subr.mxu0 0.0
    %81 = vmatpush1.msra.mxu0 0.0
    %82 = vmatprep.subr.mxu0 0.0
    %83 = vmatpush1.msra.mxu0 0.0
    %84 = vmatprep.subr.mxu0 0.0
    %85 = vmatpush1.msra.mxu0 0.0
    %86 = vmatprep.subr.mxu0 0.0
    %87 = vmatpush1.msra.mxu0 0.0
    %88 = vmatprep.subr.mxu0 0.0
    %89 = vmatpush1.msra.mxu0 0.0
    %90 = vmatprep.subr.mxu0 0.0
    %91 = vmatpush1.msra.mxu0 0.0
    %92 = vmatprep.subr.mxu0 0.0
    %93 = vmatpush1.msra.mxu0 0.0
    %94 = vmatprep.subr.mxu0 0.0
    %95 = vmatpush1.msra.mxu0 0.0
    %96 = vmatprep.subr.mxu0 0.0
    %97 = vmatpush1.msra.mxu0 0.0
    %98 = vmatprep.subr.mxu0 0.0
    %99 = vmatpush1.msra.mxu0 0.0
    %100 = vmatprep.subr.mxu0 0.0
    %101 = vmatpush1.msra.mxu0 0.0
    %102 = vmatprep.subr.mxu0 0.0
    %103 = vmatpush1.msra.mxu0 0.0
    %104 = vmatprep.subr.mxu0 0.0
    %105 = vmatpush1.msra.mxu0 0.0
    %106 = vmatprep.subr.mxu0 0.0
    %107 = vmatpush1.msra.mxu0 0.0
    %108 = vmatprep.subr.mxu0 0.0
    %109 = vmatpush1.msra.mxu0 0.0
    %110 = vmatprep.subr.mxu0 0.0
    %111 = vmatpush1.msra.mxu0 0.0
    %112 = vmatprep.subr.mxu0 0.0
    %113 = vmatpush1.msra.mxu0 0.0
    %114 = vmatprep.subr.mxu0 0.0
    %115 = vmatpush1.msra.mxu0 0.0
    %116 = vmatprep.subr.mxu0 0.0
    %117 = vmatpush1.msra.mxu0 0.0
    %118 = vmatprep.subr.mxu0 0.0
    %119 = vmatpush1.msra.mxu0 0.0
    %120 = vmatprep.subr.mxu0 0.0
    %121 = vmatpush1.msra.mxu0 0.0
    %122 = vmatprep.subr.mxu0 0.0
    %123 = vmatpush1.msra.mxu0 0.0
    %124 = vmatprep.subr.mxu0 0.0
    %125 = vmatpush1.msra.mxu0 0.0
    %126 = vmatprep.subr.mxu0 0.0
    %127 = vmatpush1.msra.mxu0 0.0
    %128 = vmatprep.subr.mxu0 0.0
    %129 = vmatpush1.msra.mxu0 0.0
    %130 = vmatprep.mubr.f32.mxu0 0.0
    %131 = vmatmul.mubr.f32.gmra.mrb[0].mxu0 %v60
    %v132 = vpop.f32.mrb[0].mxu0
    %v133 = vadd.f32 %v56, %v132
    %v134 = vpop.f32.mrb[0].mxu0
    %135 = vdwg.mxu0
    %v136 = vmax.f32 %v133, 0.0
    %v137 = vld [vmem:[%s3] sm:$0x1]
    %v139 = vlaneseq
    %v140 = vshrl.u32 %v139, 7
    %v141 = vsub.s32 0, %v140
    %v142 = vrot.slane %v137, %v141
    %v144 = vmul.f32 %v136, %v142
    %vm145 = vcmask 523264
    %v146 = vsel %vm145, %v144, 0.0
    %147 = vadd.xlane.f32.xlu0 %v146
    %v148 = vpop.xlane.xlu0 %147
    %s149 = sld [smem:[#allocation2]]
    %v150 = vstv %s149
    %v151 = vadd.f32 %v148, %v150
    %vm152 = vcmask 7168
    %153 = vst.msk [vmem:[%s5] sm:$0xff] %vm152, %v151
    // Predicated region
    $region30: #{tpu_custom_call.1} parent=1 // pred_check
      _
    $region31: #{tpu_custom_call.1} parent=1 // pred_check_branch
      %155 = sbr.rel (0) target = $region33
    $region32: #{tpu_custom_call.1} parent=1 // pred_region
      _
    $region33: #{tpu_custom_call.1} parent=1 // pred_fallthru
      _
    // Predicated region
    $region34: #{tpu_custom_call.1} parent=1 // pred_check
      _
    $region35: #{tpu_custom_call.1} parent=1 // pred_check_branch
      %157 = sbr.rel (0) target = $region37
    $region36: #{tpu_custom_call.1} parent=1 // pred_region
      _
    $region37: #{tpu_custom_call.1} parent=1 // pred_fallthru
      _
    %158 = vsyncpa [#allocation4], 1
    %159 = vsyncpa [#allocation6], 1

</llo_original>
